<compile_context>
chip_gen: v5e
topology: v5e:2x2
jax: 0.10.0
libtpu: 0.0.40
codegen_flags: <defaults>
</compile_context>

<pallas_src>
import functools

import jax
import jax.numpy as jnp
from jax import lax
from jax.experimental import pallas as pl
from jax.experimental.pallas import tpu as pltpu

NEG_SLOPE = 0.2    # LeakyReLU slope used by GraphLayer attention
BN_EPS = 1e-5
MASK_BIAS = -1e30  # additive bias for non-edges (exp underflows to 0)


# ---------------------------------------------------------------------------
# Kernel 1: cosine-similarity matrix of the embedding table (graph learning)
# ---------------------------------------------------------------------------
def _cos_sim_kernel(w_ref, o_ref):
    w = w_ref[...]                                                   # (N, D)
    # Row-normalize first, then a single gram matmul (no rank-1 matmul,
    # no N*N divide).  Clamp matches torch's clamp(norm_i*norm_j, 1e-10)
    # for all non-degenerate rows.
    inv_n = lax.rsqrt(jnp.maximum(jnp.sum(w * w, axis=-1, keepdims=True), 1e-10))
    wn = w * inv_n
    o_ref[...] = lax.dot_general(wn, wn, (((1,), (1,)), ((), ())),
                                 preferred_element_type=jnp.float32)


def cosine_similarity(emb):
    n, d = emb.shape
    return pl.pallas_call(
        _cos_sim_kernel,
        out_shape=jax.ShapeDtypeStruct((n, n), jnp.float32),
        grid=(1,),
        in_specs=[pl.BlockSpec((n, d), lambda i: (0, 0))],
        out_specs=pl.BlockSpec((n, n), lambda i: (0, 0)),
    )(emb)


# ---------------------------------------------------------------------------
# Graph construction (hoisted: depends only on the constant embedding table).
# ---------------------------------------------------------------------------
def build_graph(emb, topk):
    n = emb.shape[0]
    cos = cosine_similarity(emb)
    vals, idx = lax.top_k(cos, topk)
    # Reference GDN drops top-k edges whose similarity is exactly 0
    # (gated_edge[2,:] != 0 filter) -- reproduce that gating.
    gate = (vals != 0).astype(jnp.float32)
    rows = jnp.arange(n, dtype=jnp.int32)[:, None]
    adj = jnp.zeros((n, n), jnp.float32).at[rows, idx].max(gate)   # scatter mask
    adj = jnp.maximum(adj, jnp.eye(n, dtype=jnp.float32))          # self loops
    return adj


# ---------------------------------------------------------------------------
# Kernel 2: fused GNN attention + (folded) BN/gate/BN/relu + batched OutLayer.
# Processes `TB` batches per grid step.
# ---------------------------------------------------------------------------
def _gdn_kernel(x_ref, emb_ref, mbias_ref, wlin_ref, pk_ref, a_ref, b_ref,
                pred_ref, rep_ref, gm_scr, ai_scr):
    tb, n, f_in = x_ref.shape
    d = emb_ref.shape[1]
    mdt = gm_scr.dtype            # MXU dtype (bf16 by default)

    e = emb_ref[...]              # (N, D)  embedding table (attention keys)
    mask_bias = mbias_ref[...]    # (N, N)  0 for edges, -1e30 for non-edges
    pk = pk_ref[...]              # (8, D)  packed small params
    att_i, att_j = pk[0:1, :], pk[1:2, :]
    att_em_i, att_em_j = pk[2:3, :], pk[3:4, :]
    outw, outb = pk[4:5, :], pk[5:6, 0:1]
    fold_a = a_ref[...]           # (N, D)  folded scale  (BN1*emb*BN2)
    fold_b = b_ref[...]           # (N, D)  folded bias   (gnn_bias/BN1/BN2)

    # ---- hoisted, once per grid step (covers all TB batches) --------------
    # x @ wlin for all TB batches at once -> M = TB*N on the MXU.
    x2 = x_ref[...].reshape(tb * n, f_in)
    g_all = jnp.dot(x2.astype(mdt), wlin_ref[...],
                    preferred_element_type=jnp.float32)           # (TB*N, D) f32

    # Per-node attention scores (embedding part is batch-independent).
    ai_e = jnp.sum(e * att_em_i, axis=-1, keepdims=True)           # (N, 1)
    aj_e = lax.dot_general(att_em_j, e, (((1,), (1,)), ((), ())),
                           preferred_element_type=jnp.float32)     # (1, N)
    ai_scr[...] = jnp.sum(g_all * att_i, axis=-1, keepdims=True)   # (TB*N, 1)
    aj_x = lax.dot_general(att_j, g_all, (((1,), (1,)), ((), ())),
                           preferred_element_type=jnp.float32)     # (1, TB*N)

    # One bf16 cast, staged in VMEM so the unrolled loop holds no big values.
    gm_scr[...] = g_all.astype(mdt)

    # TODO(synk): for node counts >> 256 the (N, N) attention intermediates
    # should be row/column tiled with an online softmax (flash-style).
    for t in range(tb):   # tb is kept small (<= 8) by the wrapper
        a_i = ai_scr[t * n:(t + 1) * n, :] + ai_e                   # (N, 1)
        a_j = aj_x[:, t * n:(t + 1) * n] + aj_e                     # (1, N)
        s = a_i + a_j                                               # VPU broadcast add
        s = jnp.where(s >= 0, s, NEG_SLOPE * s) + mask_bias         # leaky + mask
        m = jnp.max(s, axis=-1, keepdims=True)
        p = jnp.exp(s - m)                                          # masked -> exactly 0
        alpha = p * pl.reciprocal(jnp.sum(p, axis=-1, keepdims=True),
                                  approx=True)                      # row softmax
        g_m = gm_scr[t * n:(t + 1) * n, :]                          # (N, D) bf16
        h = jnp.dot(alpha.astype(mdt), g_m,
                    preferred_element_type=jnp.float32)             # (N, D)
        # folded: GraphLayer bias + BN1(eval) + emb gate + BN2(eval) + relu
        rep_ref[t] = jnp.maximum(h * fold_a + fold_b, 0.0)

    # ---- batched OutLayer Linear(D, 1): one lane-dense (1, TB*N) row ------
    o_all = rep_ref[...].reshape(tb * n, d)
    pred_ref[0] = lax.dot_general(outw, o_all, (((1,), (1,)), ((), ())),
                                  preferred_element_type=jnp.float32) + outb


# ---------------------------------------------------------------------------
# Wrapper (glue: BN folding, parameter packing, batch tiling, VMEM budget)
# ---------------------------------------------------------------------------
def _default_batch_tile(b, n):
    # grid >= 4 for pipelining headroom (>= 2 steps per v7x TensorCore),
    # TB*N <= 512 rows, small unroll, tb must divide b.
    if b <= 4:
        return 1
    tb = max(1, min(b // 4, max(1, 512 // max(n, 1)), 8))
    while b % tb:
        tb -= 1
    return tb


def _vmem_limit_bytes(tb, n, d, f_in, mxu_bf16):
    def pad(v, m):
        return -(-v // m) * m
    f32, mdt = 4, (2 if mxu_bf16 else 4)
    # single-buffered constants: emb, fold_a, fold_b, mask_bias, pk, w_lin
    const = (3 * pad(n, 8) * pad(d, 128) + pad(n, 8) * pad(n, 128)
             + 8 * pad(d, 128)) * f32 + pad(f_in, 8) * pad(d, 128) * mdt
    # double-buffered streamed blocks: x, rep, pred
    stream = 2 * (tb * pad(n, 8) * pad(f_in, 128) * f32
                  + tb * pad(n, 8) * pad(d, 128) * f32
                  + pad(tb * n, 128) * f32)
    scratch = tb * n * pad(d, 128) * mdt + tb * n * 128 * f32
    budget = 4 * (const + stream + scratch) + (4 << 20)   # headroom for Mosaic
    try:
        phys = int(pltpu.get_tpu_info().vmem_capacity_bytes)
    except Exception:
        phys = 64 << 20            # v7x worst case
    return int(min(max(budget, 32 << 20), (phys * 3) // 4))


def gdn_forward(x, params, adj, batch_tile=None, mxu_bf16=True):
    b, n, f_in = x.shape
    emb = params["embedding"]
    d = emb.shape[1]
    # TODO(synk): pad N up to a multiple of 8 (ideally 128) for unaligned node
    # counts, masking padded rows through mask_bias; not needed for aligned N.
    tb = _default_batch_tile(b, n) if batch_tile is None else batch_tile
    assert b % tb == 0

    # ---- fold the eval-mode BatchNorms / biases into two (N, D) arrays ----
    # (the reference has no ReLU between BN1 and the embedding gate, so the
    #  single FMA + final ReLU is exact)
    s1 = params["bn1_gamma"] * lax.rsqrt(params["bn1_var"] + BN_EPS)
    c1 = params["gnn_bias"] * s1 + params["bn1_beta"] - params["bn1_mean"] * s1
    s2 = params["bn2_gamma"] * lax.rsqrt(params["bn2_var"] + BN_EPS)
    c2 = params["bn2_beta"] - params["bn2_mean"] * s2
    fold_a = emb * (s1 * s2)[None, :]                    # scales alpha@g
    fold_b = emb * (c1 * s2)[None, :] + c2[None, :]      # additive term

    # ---- pack the small per-D parameter vectors into one (8, D) tile ----
    pk = jnp.stack([params["att_i"], params["att_j"],
                    params["att_em_i"], params["att_em_j"],
                    params["out_w"], jnp.full((d,), params["out_b"][0]),
                    jnp.zeros((d,), jnp.float32), jnp.zeros((d,), jnp.float32)],
                   axis=0).astype(jnp.float32)

    # Masked softmax as one precomputed additive bias; self loops in adj
    # guarantee every row keeps at least one finite entry.
    mask_bias = jnp.where(adj > 0, 0.0, MASK_BIAS).astype(jnp.float32)

    mdt = jnp.bfloat16 if mxu_bf16 else jnp.float32
    w_lin = params["w_lin"].astype(mdt)                  # one-time constant cast

    def _const(shape):
        nd = len(shape)
        return pl.BlockSpec(shape, lambda i: (0,) * nd,
                            pipeline_mode=pl.Buffered(1))   # single-buffer constants

    cost = pl.CostEstimate(
        flops=int(2 * b * n * (f_in * d + n * d + 2 * d) + 6 * b * n * n),
        transcendentals=int(b * n * (n + 1)),
        bytes_accessed=int(4 * (b * n * f_in + b * n * d + b * n)
                           + 4 * (3 * n * d + 2 * n * n + f_in * d + 8 * d)),
    )

    pred, rep = pl.pallas_call(
        _gdn_kernel,
        out_shape=(jax.ShapeDtypeStruct((b // tb, 1, tb * n), jnp.float32),
                   jax.ShapeDtypeStruct((b, n, d), jnp.float32)),
        grid=(b // tb,),
        in_specs=[
            pl.BlockSpec((tb, n, f_in), lambda i: (i, 0, 0)),  # x (streamed)
            _const((n, d)),       # embedding
            _const((n, n)),       # additive mask bias
            _const((f_in, d)),    # lin weight (pre-cast to MXU dtype)
            _const((8, d)),       # packed att/out params
            _const((n, d)),       # folded scale A
            _const((n, d)),       # folded bias  B
        ],
        out_specs=(
            pl.BlockSpec((1, 1, tb * n), lambda i: (i, 0, 0)),   # lane-dense pred
            # TODO(synk): emit rep as lane-dense (b, N*D) blocks when
            # N*D % 128 == 0 to avoid masked partial stores (D < 128).
            pl.BlockSpec((tb, n, d), lambda i: (i, 0, 0)),       # representation
        ),
        scratch_shapes=[pltpu.VMEM((tb * n, d), mdt),            # staged bf16 g
                        pltpu.VMEM((tb * n, 1), jnp.float32)],   # staged a_i column
        compiler_params=pltpu.CompilerParams(
            dimension_semantics=("parallel",),
            vmem_limit_bytes=_vmem_limit_bytes(tb, n, d, f_in, mxu_bf16)),
        cost_estimate=cost,
    )(x, emb, mask_bias, w_lin, pk, fold_a, fold_b)

    predictions = pred.reshape(b // tb, tb, n).reshape(b, n)  # == view(-1, node_num)
    return predictions, rep


# ---------------------------------------------------------------------------
# Deterministic parameter initialization (shapes from GDN.__init__)
# ---------------------------------------------------------------------------
def init_params(key, node_num, input_dim, dim):
    ks = jax.random.split(key, 8)
    xb = (6.0 / (node_num + dim)) ** 0.5          # xavier_uniform_ (embedding)
    lb = (6.0 / (input_dim + dim)) ** 0.5         # glorot (lin)
    ab = (6.0 / (1 + dim)) ** 0.5                 # glorot-ish (attention vecs)
    ob = 1.0 / (dim ** 0.5)                       # torch Linear default
    return {
        "embedding": jax.random.uniform(ks[0], (node_num, dim), jnp.float32, -xb, xb),
        "w_lin": jax.random.uniform(ks[1], (input_dim, dim), jnp.float32, -lb, lb),
        "att_i": jax.random.uniform(ks[2], (dim,), jnp.float32, -ab, ab),
        "att_j": jax.random.uniform(ks[3], (dim,), jnp.float32, -ab, ab),
        "att_em_i": jax.random.uniform(ks[4], (dim,), jnp.float32, -ab, ab),
        "att_em_j": jax.random.uniform(ks[5], (dim,), jnp.float32, -ab, ab),
        "gnn_bias": jnp.zeros((dim,), jnp.float32),
        "bn1_gamma": jnp.ones((dim,), jnp.float32),
        "bn1_beta": jnp.zeros((dim,), jnp.float32),
        "bn1_mean": jnp.zeros((dim,), jnp.float32),
        "bn1_var": jnp.ones((dim,), jnp.float32),
        "bn2_gamma": jnp.ones((dim,), jnp.float32),
        "bn2_beta": jnp.zeros((dim,), jnp.float32),
        "bn2_mean": jnp.zeros((dim,), jnp.float32),
        "bn2_var": jnp.ones((dim,), jnp.float32),
        "out_w": jax.random.uniform(ks[6], (dim,), jnp.float32, -ob, ob),
        "out_b": jax.random.uniform(ks[7], (1,), jnp.float32, -ob, ob),
    }


if __name__ == "__main__":
    # small shapes consistent with GDN.forward: data is (batch, node_num, input_dim)
    B, N, F_IN, D, TOPK = 4, 16, 8, 32, 4
    key = jax.random.PRNGKey(0)
    kx, kp = jax.random.split(key)
    x = jax.random.normal(kx, (B, N, F_IN), jnp.float32)
    params = init_params(kp, N, F_IN, D)

    # Graph learning is hoisted: depends only on the (constant) embedding table.
    adj = jax.jit(functools.partial(build_graph, topk=TOPK))(params["embedding"])

    # TODO(synk): dropout(p=0.2) / BatchNorm batch-statistics (training mode) are
    # not modeled; forward is implemented in inference (eval) semantics.
    fwd = jax.jit(functools.partial(gdn_forward, batch_tile=None, mxu_bf16=True))
    predictions, out_rep = fwd(x, params, adj)
    jax.block_until_ready((predictions, out_rep))
    assert predictions.shape == (B, N)
    assert out_rep.shape == (B, N, D)
    print("KERNEL_OK")
</pallas_src>

<mosaic_0001>
module attributes {stable_mosaic.version = 11 : i64} {
  func.func @_cos_sim_kernel(%arg0: i32, %arg1: memref<16x32xf32, #tpu.memory_space<vmem>>, %arg2: memref<16x16xf32, #tpu.memory_space<vmem>>) attributes {dimension_semantics = [#tpu.dimension_semantics<arbitrary>], iteration_bounds = array<i64: 1>, scalar_prefetch = 0 : i64, scratch_operands = 0 : i64, tpu.core_type = #tpu.core_type<tc>, window_params = [{pipeline_mode = #tpu.pipeline_mode<synchronous>, transform_indices = @transform_0, window_bounds = array<i64: 16, 32>}, {pipeline_mode = #tpu.pipeline_mode<synchronous>, transform_indices = @transform_1, window_bounds = array<i64: 16, 16>}]} {
    %c0 = arith.constant 0 : index
    %c0_0 = arith.constant 0 : index
    %0 = vector.load %arg1[%c0, %c0_0] : memref<16x32xf32, #tpu.memory_space<vmem>>, vector<16x32xf32>
    %1 = arith.mulf %0, %0 : vector<16x32xf32>
    %cst = arith.constant dense<0.000000e+00> : vector<16xf32>
    %2 = vector.multi_reduction <add>, %1, %cst [1] : vector<16x32xf32> to vector<16xf32>
    %3 = vector.shape_cast %2 : vector<16xf32> to vector<16x1xf32>
    %cst_1 = arith.constant 1.000000e-10 : f32
    %4 = vector.broadcast %cst_1 : f32 to vector<16x1xf32>
    %5 = arith.maximumf %3, %4 : vector<16x1xf32>
    %6 = math.rsqrt %5 : vector<16x1xf32>
    %7 = vector.broadcast %6 : vector<16x1xf32> to vector<16x32xf32>
    %8 = arith.mulf %0, %7 : vector<16x32xf32>
    %cst_2 = arith.constant dense<0.000000e+00> : vector<16x16xf32>
    %9 = tpu.matmul %8, %8, %cst_2 {dimension_numbers = #tpu.dot_dimension_numbers<[1], [1], [0], [0], [0, 0, 1, 0], [], []>} : vector<16x32xf32>, vector<16x32xf32>, vector<16x16xf32> -> vector<16x16xf32>
    %c0_3 = arith.constant 0 : index
    %c0_4 = arith.constant 0 : index
    %10 = vector.load %arg2[%c0_3, %c0_4] : memref<16x16xf32, #tpu.memory_space<vmem>>, vector<16x16xf32>
    tpu.vector_store %arg2[%c0_3, %c0_4], %9 {strides = array<i32>} : memref<16x16xf32, #tpu.memory_space<vmem>>, vector<16x16xf32>,
    return
  }
  func.func @transform_0(%arg0: i32) -> (i32, i32) {
    %c0_i32 = arith.constant 0 : i32
    %c0_i32_0 = arith.constant 0 : i32
    %c0_i32_1 = arith.constant 0 : i32
    return %c0_i32, %c0_i32_0 : i32, i32
  }
  func.func @transform_1(%arg0: i32) -> (i32, i32) {
    %c0_i32 = arith.constant 0 : i32
    %c0_i32_0 = arith.constant 0 : i32
    %c0_i32_1 = arith.constant 0 : i32
    return %c0_i32, %c0_i32_0 : i32, i32
  }
}

</mosaic_0001>

<llo_original>
// kernel: build_graph.1
$region0: #{build_graph.1}
  #allocation0 [shape = 'u32[]', space=smem, size = 0x4, offset = 0x4, fixed_abs, tag = 'smem constant byte address 0x4 - core index']
  #allocation1 [shape = 'u32[72,128]{1,0:T(1,128)}', space=vmem, size = 0x9000, scoped, tag = 'internal scratch']
  %s0 = inlined_call_operand.hbm [shape: f32[16,32], index: 0, kind: input, shape index: {}]
  %s1 = inlined_call_operand.vmem [shape: f32[16,16], index: 1, kind: output, shape index: {}]
  %s2 = sld [smem:[#allocation0]]
  $region18: #{build_graph.1} parent=0
    _
  %s4 = ssub.s32 1, %s2
  %s5 = scalar_select 0, %s4, %s2
  $region1: #{build_graph.1} parent=0
    #allocation2 [shape = 'u8[8192]{0}', space=vmem, size = 0x2000, scoped, tag = 'input window, operand 0, single buffered']
    #allocation3 [shape = 's32[1]{0}', space=sflag, size = 0x4, scoped, tag = 'scoped memory for build_graph.1']
    %6 = vsyncpa [#allocation3], 0
    // Predicated region
    $region2: #{build_graph.1} parent=1 // pred_check
      _
    $region3: #{build_graph.1} parent=1 // pred_check_branch
      %8 = sbr.rel (0) target = $region5
    $region4: #{build_graph.1} parent=1 // pred_region
      %10 = vsyncadd [#allocation3], 0
      %s11 = sshll.u32 %s0, 4
      %s12 = int_to_ptr.hbm [resolvable:$true] %s11
      %s13 = sshll.u32 [#allocation2], 4
      %s14 = int_to_ptr.vmem [resolvable:$true] %s13
      %19 = dma.hbm_to_vmem [thread:$0]  %s12, 256, %s14, [#allocation3], 128, 128, 8
    $region5: #{build_graph.1} parent=1 // pred_fallthru
      _
    // Predicated region
    $region6: #{build_graph.1} parent=1 // pred_check
      _
    $region7: #{build_graph.1} parent=1 // pred_check_branch
      %21 = sbr.rel (0) target = $region9
    $region8: #{build_graph.1} parent=1 // pred_region
      %23 = dma.done [#allocation3], 256
    $region9: #{build_graph.1} parent=1 // pred_fallthru
      _
    %v24 = vld [vmem:[#allocation2] sm:$0xff]
    %v25 = vld [vmem:[#allocation2 + $0x8] sm:$0xff]
    %v26 = vmul.f32 %v24, %v24
    %v27 = vmul.f32 %v25, %v25
    %vm28 = vcmask 261120
    %v29 = vsel %vm28, %v26, 0.0
    %30 = vadd.xlane.f32.xlu0 %v29
    %v31 = vpop.xlane.xlu0 %30
    %v32 = vsel %vm28, %v27, 0.0
    %33 = vadd.xlane.f32.xlu0 %v32
    %v34 = vpop.xlane.xlu0 %33
    %v35 = vmax.f32 %v31, 1e-10
    %v36 = vmax.f32 %v34, 1e-10
    %v37 = vrsqrt.pop %v35
    %v38 = vmul.f32 %v37, %v35
    %v39 = vmul.f32 %v38, %v37
    %v40 = vmul.f32 0.5, %v39
    %v41 = vsub.f32 1.5, %v40
    %v42 = vmul.f32 %v37, %v41
    %vm43 = vweird.f32 %v35
    %vm44 = vweird.f32 %v37
    %vm45 = vmor %vm43, %vm44
    %v46 = vsel %vm45, %v37, %v42
    %v47 = vrsqrt.pop %v36
    %v48 = vmul.f32 %v47, %v36
    %v49 = vmul.f32 %v48, %v47
    %v50 = vmul.f32 0.5, %v49
    %v51 = vsub.f32 1.5, %v50
    %v52 = vmul.f32 %v47, %v51
    %vm53 = vweird.f32 %v36
    %vm54 = vweird.f32 %v47
    %vm55 = vmor %vm53, %vm54
    %v56 = vsel %vm55, %v47, %v52
    %v57 = vmul.f32 %v24, %v46
    %v58 = vmul.f32 %v25, %v56
    %v60 = vsel %vm28, %v57, 0
    %v63 = vsel %vm28, %v58, 0
    %65 = vmatpush.xpose.msra.mxu0 0.0
    %66 = vmatpush.xpose.msra.mxu0 0.0
    %67 = vmatpush.xpose.msra.mxu0 0.0
    %68 = vmatpush.xpose.msra.mxu0 0.0
    %69 = vmatpush.xpose.msra.mxu0 0.0
    %70 = vmatpush.xpose.msra.mxu0 0.0
    %71 = vmatpush.xpose.msra.mxu0 0.0
    %72 = vmatpush.xpose.msra.mxu0 0.0
    %73 = vmatpush.xpose.msra.mxu0 0.0
    %74 = vmatpush.xpose.msra.mxu0 0.0
    %75 = vmatpush.xpose.msra.mxu0 0.0
    %76 = vmatpush.xpose.msra.mxu0 0.0
    %77 = vmatpush.xpose.msra.mxu0 0.0
    %78 = vmatpush.xpose.msra.mxu0 0.0
    %79 = vmatpush.xpose.msra.mxu0 %v63
    %80 = vmatpush.xpose.msra.mxu0 %v60
    %81 = vmatmul.f32.gmra.mxu0 %v60
    %v82 = vpop.f32.mrf.mxu0
    %v83 = vadd.f32 0.0, %v82
    %84 = vmatmul.f32.gmra.mxu0 %v63
    %v85 = vpop.f32.mrf.mxu0
    %v86 = vadd.f32 0.0, %v85
    %87 = vdwg.mxu0
    %vm88 = vcmask 130048
    %89 = vst.msk [vmem:[%s1] sm:$0xff] %vm88, %v83
    %90 = vst.msk [vmem:[%s1 + $0x8] sm:$0xff] %vm88, %v86
    // Predicated region
    $region10: #{build_graph.1} parent=1 // pred_check
      _
    $region11: #{build_graph.1} parent=1 // pred_check_branch
      %92 = sbr.rel (0) target = $region13
    $region12: #{build_graph.1} parent=1 // pred_region
      _
    $region13: #{build_graph.1} parent=1 // pred_fallthru
      _
    // Predicated region
    $region14: #{build_graph.1} parent=1 // pred_check
      _
    $region15: #{build_graph.1} parent=1 // pred_check_branch
      %94 = sbr.rel (0) target = $region17
    $region16: #{build_graph.1} parent=1 // pred_region
      _
    $region17: #{build_graph.1} parent=1 // pred_fallthru
      _
    %95 = vsyncpa [#allocation3], 1

</llo_original>
